<compile_context>
chip_gen: v5e
topology: v5e:2x2
jax: 0.10.0
libtpu: 0.0.40
codegen_flags: <defaults>
</compile_context>

<pallas_src>
import functools

import jax
import jax.numpy as jnp
from jax.experimental import pallas as pl
from jax.experimental.pallas import tpu as pltpu

LANES = 512  # lane-dense slab width (multiple of 128 -> unmasked full-width vst)


def _cdiv(a: int, b: int) -> int:
    return -(-a // b)


def _round_up(x: int, m: int) -> int:
    return _cdiv(x, m) * m


def _sublane_multiple(dtype) -> int:
    # f32 -> 8, bf16 -> 16, int8/fp8 -> 32 (sub-32-bit dtypes pack along sublanes).
    return max(8, 32 // jnp.dtype(dtype).itemsize)


def _tile_config():
    """Generation-aware (max_tile_rows, vmem_limit_bytes)."""
    vmem_bytes = None
    try:
        vmem_bytes = getattr(pltpu.get_tpu_info(), "vmem_capacity_bytes", None)
    except Exception:
        vmem_bytes = None
    if vmem_bytes is None or vmem_bytes <= 64 * 1024 * 1024:
        # v7x (64 MiB VMEM): 4 MiB f32 tiles -> 3 arrays x 2 buffers x 4 MiB = 24 MiB.
        return 2048, 32 * 1024 * 1024
    # v5e / v6e (128 MiB VMEM): 8 MiB f32 tiles -> 48 MiB resident.
    return 4096, 64 * 1024 * 1024


def _make_ema_kernel(one_minus_m: float, m: float):
    # momentum is static per load call -> close over Python floats (no SMEM DMA,
    # the two multipliers constant-fold).
    def kernel(disk_ref, cur_ref, out_ref):
        d = disk_ref[...].astype(jnp.float32)
        c = cur_ref[...].astype(jnp.float32)
        # Blend in f32 even for bf16 slabs (slightly more accurate than pure-bf16).
        out_ref[...] = (d * one_minus_m + c * m).astype(out_ref.dtype)
    return kernel


@functools.partial(jax.jit,
                   static_argnames=("momentum", "tile_rows", "vmem_limit"),
                   donate_argnums=(1,))
def _ema_blend_slab(disk_slab, cur_slab, *, momentum, tile_rows, vmem_limit):
    """new_slab = disk_slab * (1 - momentum) + cur_slab * momentum (one pallas_call).

    cur_slab (the live packed parameter slab) is donated and aliased to the
    output, so the EMA update is a true in-place HBM update.
    """
    R, C = disk_slab.shape
    assert cur_slab.shape == (R, C) and R % tile_rows == 0 and C % 128 == 0
    itemsize = jnp.dtype(cur_slab.dtype).itemsize
    kernel = _make_ema_kernel(1.0 - momentum, momentum)
    return pl.pallas_call(
        kernel,
        out_shape=jax.ShapeDtypeStruct((R, C), cur_slab.dtype),
        grid=(R // tile_rows,),
        in_specs=[
            pl.BlockSpec((tile_rows, C), lambda i: (i, 0)),   # disk slab tile
            pl.BlockSpec((tile_rows, C), lambda i: (i, 0)),   # live param slab tile
        ],
        out_specs=pl.BlockSpec((tile_rows, C), lambda i: (i, 0)),
        input_output_aliases={1: 0},          # in-place EMA on the live slab
        compiler_params=pltpu.CompilerParams(
            dimension_semantics=("parallel",),  # >= 2 tiles -> both v7x TCs
            vmem_limit_bytes=vmem_limit,
        ),
        cost_estimate=pl.CostEstimate(
            flops=3 * R * C,
            transcendentals=0,
            bytes_accessed=3 * R * C * itemsize),
    )(disk_slab, cur_slab)


class _PackedGroup:
    """All parameters of one floating dtype, kept permanently packed as a
    lane-dense [rows, LANES] slab (packed once; per-key views only on read)."""

    def __init__(self, dtype, items, max_tile_rows):
        self.dtype = jnp.dtype(dtype)
        sub = _sublane_multiple(self.dtype)
        self.layout = []          # (key, shape, offset, size)
        flats, off = [], 0
        for k, v in items:
            v = jnp.asarray(v, dtype=self.dtype)
            self.layout.append((k, tuple(v.shape), off, int(v.size)))
            flats.append(v.reshape(-1))
            off += int(v.size)
        self.numel = off
        rows = _round_up(_cdiv(self.numel, LANES), sub)
        # >= 2 grid steps whenever possible (v7x megacore); cap tile rows to
        # amortize the ~0.35 us per-grid-step overhead with big tiles.
        grid = max(2, _cdiv(rows, max_tile_rows)) if rows > sub else 1
        self.tile_rows = _round_up(_cdiv(rows, grid), sub)
        self.rows = self.tile_rows * grid
        self.slab = self._pack_flat(flats)     # pack ONCE

    def _pack_flat(self, flats):
        flat = flats[0] if len(flats) == 1 else jnp.concatenate(flats)
        pad = self.rows * LANES - int(flat.size)
        if pad:
            flat = jnp.concatenate([flat, jnp.zeros((pad,), self.dtype)])
        return flat.reshape(self.rows, LANES)

    def get(self, key):
        for k, shape, off, size in self.layout:
            if k == key:
                return self.slab.reshape(-1)[off:off + size].reshape(shape)
        raise KeyError(key)

    def ema_update(self, disk_state, momentum, vmem_limit):
        matched, disk_flats, restore = [], [], []
        cur_flat = None
        for k, shape, off, size in self.layout:
            v = disk_state.get(k)
            if v is not None and tuple(jnp.shape(v)) == shape:
                matched.append(k)
                disk_flats.append(jnp.asarray(v, dtype=self.dtype).reshape(-1))
            else:
                # Unmatched key: blend-with-self in the slab, then restore the
                # exact original values (matches torch strict=False skip exactly).
                if cur_flat is None:
                    cur_flat = self.slab.reshape(-1)
                cur = jax.lax.dynamic_slice(cur_flat, (off,), (size,))
                disk_flats.append(cur)
                restore.append((off, cur))
        if not matched:
            return []
        del cur_flat  # drop any view of the live slab before donating it
        disk_slab = self._pack_flat(disk_flats)
        new_slab = _ema_blend_slab(disk_slab, self.slab,
                                   momentum=float(momentum),
                                   tile_rows=self.tile_rows,
                                   vmem_limit=vmem_limit)
        if restore:
            flat = new_slab.reshape(-1)
            for off, cur in restore:
                flat = jax.lax.dynamic_update_slice(flat, cur, (off,))
            new_slab = flat.reshape(self.rows, LANES)
        self.slab = new_slab
        return matched


class PackedParamStore:
    """Parameter store kept permanently packed into per-dtype lane-dense slabs."""

    def __init__(self, params):
        self.max_tile_rows, self.vmem_limit = _tile_config()
        self.raw = {}            # non-floating buffers: copied, never EMA-blended
        self._order = list(params.keys())
        by_dtype = {}
        for k, v in params.items():
            v = jnp.asarray(v)
            if jnp.issubdtype(v.dtype, jnp.floating):
                by_dtype.setdefault(jnp.dtype(v.dtype), []).append((k, v))
            else:
                self.raw[k] = v
        self.groups = {dt: _PackedGroup(dt, items, self.max_tile_rows)
                       for dt, items in by_dtype.items()}
        self._key_to_group = {k: g for g in self.groups.values()
                              for (k, _, _, _) in g.layout}

    def keys(self):
        return list(self._order)

    def get(self, key):
        if key in self.raw:
            return self.raw[key]
        return self._key_to_group[key].get(key)

    def as_dict(self):
        return {k: self.get(k) for k in self._order}

    def ema_update(self, disk_state, momentum):
        updated = []
        for g in self.groups.values():
            updated += g.ema_update(disk_state, momentum, self.vmem_limit)
        # TODO(synk): torch blends integer buffers with float math and truncates on
        # load_state_dict; we copy matched non-floating buffers instead (safer).
        for k, v in list(self.raw.items()):
            dv = disk_state.get(k)
            if dv is not None and tuple(jnp.shape(dv)) == tuple(v.shape):
                self.raw[k] = jnp.asarray(dv).astype(v.dtype)
                updated.append(k)
        return updated


class RegistrationTemplateJAX:
    """JAX mirror of RegistrationTemplate's stateful tensor behavior.

    forward() is NotImplementedError in the reference (template class), so the
    only tensor compute is the EMA state-dict blend, executed as one Pallas
    streaming kernel per packed dtype slab.
    """

    def __init__(self, model_cfg, params):
        self.model_cfg = dict(model_cfg)
        self.scale = self.model_cfg.pop("SCALE", 1)
        self.module_topology = ["preprocessors", "registration", "visualizer"]
        # torch registers an int64 buffer; int32 here (wraps at 2^31 steps).
        self.global_step = jnp.zeros((1,), dtype=jnp.int32)
        self.training = True
        self.store = PackedParamStore(params)

    @property
    def mode(self):
        return "TRAIN" if self.training else "TEST"

    def update_ema(self):
        pass

    def update_global_step(self):
        # Plain JAX: a Pallas call for +1 on one int32 is pure launch overhead.
        self.global_step = self.global_step + 1

    def state_dict(self):
        return self.store.as_dict()

    def load_and_ema_state_dict(self, model_state_disk, momentum):
        """Mirror of _load_and_ema_state_dict(strict=False): matched keys are
        EMA-blended in place on the packed slabs; unmatched keys are untouched."""
        return self.store.ema_update(model_state_disk, momentum)

    def forward(self, **kwargs):
        # TODO(synk): forward() raises NotImplementedError in the reference template.
        raise NotImplementedError

    # TODO(synk): build_networks/build_* and load_params_from_file are module
    # construction / checkpoint-file I/O with no tensor semantics to port.


if __name__ == "__main__":
    k0, k1, k2, k3, k4, k5 = jax.random.split(jax.random.PRNGKey(0), 6)
    params = {
        "registration.weight": jax.random.normal(k0, (32, 128), dtype=jnp.float32),
        "registration.bias": jax.random.normal(k1, (37,), dtype=jnp.float32),
        "preprocessors.0.conv.weight": jax.random.normal(k2, (8, 3, 3, 3), dtype=jnp.float32),
        "registration.proj.weight": jax.random.normal(k3, (16, 64), dtype=jnp.float32).astype(jnp.bfloat16),
        "visualizer.gamma": jax.random.normal(k4, (12,), dtype=jnp.float32),       # not in disk -> unchanged
        "visualizer.dummy": jax.random.normal(k5, (4, 4), dtype=jnp.float32),      # shape-mismatch -> skipped
        "registration.num_batches_tracked": jnp.zeros((1,), dtype=jnp.int32),      # non-float -> copied
    }
    model = RegistrationTemplateJAX({"SCALE": 2}, params)

    # --- global_step increment (plain JAX, per perf review) ---
    model.update_global_step()
    model.update_global_step()
    assert int(jax.block_until_ready(model.global_step)[0]) == 2

    # --- EMA parameter blend (one Pallas call per packed dtype slab, in place) ---
    d = jax.random.split(jax.random.PRNGKey(1), 6)
    disk_state = {
        "registration.weight": jax.random.normal(d[0], (32, 128), dtype=jnp.float32),
        "registration.bias": jax.random.normal(d[1], (37,), dtype=jnp.float32),
        "preprocessors.0.conv.weight": jax.random.normal(d[2], (8, 3, 3, 3), dtype=jnp.float32),
        "registration.proj.weight": jax.random.normal(d[3], (16, 64), dtype=jnp.float32).astype(jnp.bfloat16),
        "registration.num_batches_tracked": jnp.full((1,), 7, dtype=jnp.int32),
        "visualizer.dummy": jax.random.normal(d[4], (5, 5), dtype=jnp.float32),     # shape mismatch -> skip
        "never.seen.key": jax.random.normal(d[5], (3,), dtype=jnp.float32),         # no key match -> ignore
    }
    momentum = 0.9
    cur_before = {k: model.store.get(k) for k in params}

    updated_keys = model.load_and_ema_state_dict(disk_state, momentum)
    jax.block_until_ready([g.slab for g in model.store.groups.values()])

    expected_updated = {
        "registration.weight", "registration.bias", "preprocessors.0.conv.weight",
        "registration.proj.weight", "registration.num_batches_tracked",
    }
    assert set(updated_keys) == expected_updated, updated_keys

    for k in params:
        out = model.store.get(k)
        assert out.shape == cur_before[k].shape and out.dtype == cur_before[k].dtype, k
        if k in expected_updated:
            if jnp.issubdtype(out.dtype, jnp.floating):
                ref = (jnp.asarray(disk_state[k], jnp.float32) * (1.0 - momentum)
                       + cur_before[k].astype(jnp.float32) * momentum).astype(out.dtype)
                tol = 2e-2 if out.dtype == jnp.bfloat16 else 1e-5
                assert jnp.allclose(out.astype(jnp.float32), ref.astype(jnp.float32),
                                    rtol=tol, atol=tol), k
            else:
                assert jnp.array_equal(out, jnp.asarray(disk_state[k]).astype(out.dtype)), k
        else:
            # unmatched / shape-mismatched keys must be bit-exactly unchanged
            assert jnp.array_equal(out, cur_before[k]), k

    jax.block_until_ready([model.store.get(k) for k in params])
    print("KERNEL_OK")
</pallas_src>

<mosaic_0001>
module attributes {stable_mosaic.version = 11 : i64} {
  func.func @kernel(%arg0: i32, %arg1: memref<8x512xf32, #tpu.memory_space<vmem>>, %arg2: memref<8x512xf32, #tpu.memory_space<vmem>>, %arg3: memref<8x512xf32, #tpu.memory_space<vmem>>) attributes {dimension_semantics = [#tpu.dimension_semantics<parallel>], iteration_bounds = array<i64: 2>, scalar_prefetch = 0 : i64, scratch_operands = 0 : i64, tpu.core_type = #tpu.core_type<tc>, window_params = [{transform_indices = @transform_0, window_bounds = array<i64: 8, 512>}, {transform_indices = @transform_1, window_bounds = array<i64: 8, 512>}, {transform_indices = @transform_2, window_bounds = array<i64: 8, 512>}]} {
    %c0 = arith.constant 0 : index
    %c0_0 = arith.constant 0 : index
    %0 = vector.load %arg1[%c0, %c0_0] : memref<8x512xf32, #tpu.memory_space<vmem>>, vector<8x512xf32>
    %c0_1 = arith.constant 0 : index
    %c0_2 = arith.constant 0 : index
    %1 = vector.load %arg2[%c0_1, %c0_2] : memref<8x512xf32, #tpu.memory_space<vmem>>, vector<8x512xf32>
    %cst = arith.constant 1.000000e-01 : f32
    %2 = vector.broadcast %cst : f32 to vector<8x512xf32>
    %3 = arith.mulf %0, %2 : vector<8x512xf32>
    %cst_3 = arith.constant 0.899999976 : f32
    %4 = vector.broadcast %cst_3 : f32 to vector<8x512xf32>
    %5 = arith.mulf %1, %4 : vector<8x512xf32>
    %6 = arith.addf %3, %5 : vector<8x512xf32>
    %c0_4 = arith.constant 0 : index
    %c0_5 = arith.constant 0 : index
    %7 = vector.load %arg3[%c0_4, %c0_5] : memref<8x512xf32, #tpu.memory_space<vmem>>, vector<8x512xf32>
    tpu.vector_store %arg3[%c0_4, %c0_5], %6 {strides = array<i32>} : memref<8x512xf32, #tpu.memory_space<vmem>>, vector<8x512xf32>,
    return
  }
  func.func @transform_0(%arg0: i32) -> (i32, i32) {
    %c0_i32 = arith.constant 0 : i32
    %c0_i32_0 = arith.constant 0 : i32
    return %arg0, %c0_i32 : i32, i32
  }
  func.func @transform_1(%arg0: i32) -> (i32, i32) {
    %c0_i32 = arith.constant 0 : i32
    %c0_i32_0 = arith.constant 0 : i32
    return %arg0, %c0_i32 : i32, i32
  }
  func.func @transform_2(%arg0: i32) -> (i32, i32) {
    %c0_i32 = arith.constant 0 : i32
    %c0_i32_0 = arith.constant 0 : i32
    return %arg0, %c0_i32 : i32, i32
  }
}

</mosaic_0001>

<llo_original>
// kernel: _ema_blend_slab.1
$region0: #{_ema_blend_slab.1}
  #allocation0 [shape = 'u32[]', space=smem, size = 0x4, offset = 0x4, fixed_abs, tag = 'smem constant byte address 0x4 - core index']
  #allocation1 [shape = 'u32[72,128]{1,0:T(1,128)}', space=vmem, size = 0x9000, scoped, tag = 'internal scratch']
  %s0 = inlined_call_operand.hbm [shape: f32[16,512], index: 0, kind: input, shape index: {}]
  %s1 = inlined_call_operand.hbm [shape: f32[16,512], index: 1, kind: input, shape index: {}, may-alias: {1,2}]
  %s2 = inlined_call_operand.hbm [shape: f32[16,512], index: 2, kind: output, shape index: {}, may-alias: {1,2}]
  %s3 = sld [smem:[#allocation0]]
  $region49: #{_ema_blend_slab.1} parent=0
    _
  %s5 = ssub.s32 1, %s3
  %s6 = scalar_select 0, %s5, %s3
  $region1: #{_ema_blend_slab.1} parent=0
    #allocation2 [shape = 'u8[32768]{0}', space=vmem, size = 0x8000, scoped, tag = 'input window, operand 0']
    #allocation3 [shape = 's32[2]{0}', space=sflag, size = 0x8, scoped, tag = 'scoped memory for _ema_blend_slab.1']
    #allocation4 [shape = 's32[2]{0}', space=sflag, size = 0x8, scoped, tag = 'scoped memory for _ema_blend_slab.1']
    #allocation5 [shape = 'u8[32768]{0}', space=vmem, size = 0x8000, scoped, tag = 'input window, operand 1']
    #allocation6 [shape = 's32[2]{0}', space=sflag, size = 0x8, scoped, tag = 'scoped memory for _ema_blend_slab.1']
    #allocation7 [shape = 'u8[32768]{0}', space=vmem, size = 0x8000, scoped, tag = 'output window, operand 0']
    %7 = vsyncpa [#allocation3], 0
    %s8 = scalar_lea.sflag [#allocation3], 1
    %9 = vsyncpa %s8, 0
    %10 = vsyncpa [#allocation6], 0
    %s11 = scalar_lea.sflag [#allocation6], 1
    %12 = vsyncpa %s11, 0
    %13 = vsyncpa [#allocation4], 0
    %s14 = scalar_lea.sflag [#allocation4], 1
    %15 = vsyncpa %s14, 0
    loop: start=0, step=1, limit=4
    $region2: #{_ema_blend_slab.1} parent=1 // loop_pre_header
      _
    $region3: #{_ema_blend_slab.1} parent=1 // loop_header
      %s17 = sphi 0, %s21
      %p18 = scmp.ge.s32.totalorder %s17, 4
      %s27 = sphi 0, %s29
      %s30 = sphi 0, %s27
      %s31 = sphi 0, %s30
      %s47 = sphi 0, %s31
      %s53 = sphi 0, %s55
      %s56 = sphi 0, %s53
      %s57 = sphi 0, %s56
      %s73 = sphi 0, %s57
      %s79 = sphi 0, %s81
      %s82 = sphi 0, %s79
      %s83 = sphi 0, %s82
      %s99 = sphi 0, %s83
    $region4: #{_ema_blend_slab.1} parent=1 // loop_header_branch
      %20 = sbr.rel (%p18) target = $region8
    $region5: #{_ema_blend_slab.1} parent=1 // loop_body
      %s22 = ssub.s32 %s17, 1
      %s23 = ssub.s32 %s17, 2
      %s24 = sadd.s32 %s17, 1
      %s25 = ssub.s32 %s17, %s24
      %p26 = scmp.eq.s32.totalorder %s25, 0
      %s28 = sadd.s32 %s27, 1
      %s29 = scalar_select %p26, %s27, %s28
      %p32 = pneg %p26
      %p33 = scmp.eq.s32.totalorder %s17, 1
      %p34 = por %p32, %p33
      %p35 = scmp.ne.s32.totalorder %s27, %s30
      %p36 = scmp.eq.s32.totalorder %s17, 0
      %p37 = por %p35, %p36
      %p38 = scmp.ne.s32.totalorder %s27, %s30
      %p39 = scmp.eq.s32.totalorder %s22, 1
      %p40 = por %p38, %p39
      %p41 = scmp.ne.s32.totalorder %s30, %s31
      %p42 = scmp.eq.s32.totalorder %s22, 0
      %p43 = por %p41, %p42
      %p44 = scmp.ne.s32.totalorder %s30, %s31
      %p45 = scmp.eq.s32.totalorder %s23, 1
      %p46 = por %p44, %p45
      %p48 = scmp.ne.s32.totalorder %s31, %s47
      %p49 = scmp.eq.s32.totalorder %s23, 0
      %p50 = por %p48, %p49
      %s51 = ssub.s32 %s17, %s24
      %p52 = scmp.eq.s32.totalorder %s51, 0
      %s54 = sadd.s32 %s53, 1
      %s55 = scalar_select %p52, %s53, %s54
      %p58 = pneg %p52
      %p59 = scmp.eq.s32.totalorder %s17, 1
      %p60 = por %p58, %p59
      %p61 = scmp.ne.s32.totalorder %s53, %s56
      %p62 = scmp.eq.s32.totalorder %s17, 0
      %p63 = por %p61, %p62
      %p64 = scmp.ne.s32.totalorder %s53, %s56
      %p65 = scmp.eq.s32.totalorder %s22, 1
      %p66 = por %p64, %p65
      %p67 = scmp.ne.s32.totalorder %s56, %s57
      %p68 = scmp.eq.s32.totalorder %s22, 0
      %p69 = por %p67, %p68
      %p70 = scmp.ne.s32.totalorder %s56, %s57
      %p71 = scmp.eq.s32.totalorder %s23, 1
      %p72 = por %p70, %p71
      %p74 = scmp.ne.s32.totalorder %s57, %s73
      %p75 = scmp.eq.s32.totalorder %s23, 0
      %p76 = por %p74, %p75
      %s77 = ssub.s32 %s17, %s24
      %p78 = scmp.eq.s32.totalorder %s77, 0
      %s80 = sadd.s32 %s79, 1
      %s81 = scalar_select %p78, %s79, %s80
      %p84 = pneg %p78
      %p85 = scmp.eq.s32.totalorder %s17, 1
      %p86 = por %p84, %p85
      %p87 = scmp.ne.s32.totalorder %s79, %s82
      %p88 = scmp.eq.s32.totalorder %s17, 0
      %p89 = por %p87, %p88
      %p90 = scmp.ne.s32.totalorder %s79, %s82
      %p91 = scmp.eq.s32.totalorder %s22, 1
      %p92 = por %p90, %p91
      %p93 = scmp.ne.s32.totalorder %s82, %s83
      %p94 = scmp.eq.s32.totalorder %s22, 0
      %p95 = por %p93, %p94
      %p96 = scmp.ne.s32.totalorder %s82, %s83
      %p97 = scmp.eq.s32.totalorder %s23, 1
      %p98 = por %p96, %p97
      %p100 = scmp.ne.s32.totalorder %s83, %s99
      %p101 = scmp.eq.s32.totalorder %s23, 0
      %p102 = por %p100, %p101
      %p103 = scmp.le.s32.totalorder 1, %s17
      %p104 = scmp.lt.s32.totalorder %s17, 3
      %p105 = pnand %p103, %p104
      %p106 = pneg %p105
      // Predicated region
      $region9: #{_ema_blend_slab.1} parent=5 // pred_check
        _
      $region10: #{_ema_blend_slab.1} parent=5 // pred_check_branch
        %108 = sbr.rel (%p105) target = $region12
      $region11: #{_ema_blend_slab.1} parent=5 // pred_region
        %s109 = ssub.s32 %s17, 1
      $region12: #{_ema_blend_slab.1} parent=5 // pred_fallthru
        _
      %p110 = scmp.lt.s32.totalorder %s17, 2
      // Predicated region
      $region13: #{_ema_blend_slab.1} parent=5 // pred_check
        %p111 = pneg %p110
      $region14: #{_ema_blend_slab.1} parent=5 // pred_check_branch
        %113 = sbr.rel (%p111) target = $region16
      $region15: #{_ema_blend_slab.1} parent=5 // pred_region
        // Predicated region
        $region17: #{_ema_blend_slab.1} parent=15 // pred_check
          %p114 = pneg %p37
        $region18: #{_ema_blend_slab.1} parent=15 // pred_check_branch
          %116 = sbr.rel (%p114) target = $region20
        $region19: #{_ema_blend_slab.1} parent=15 // pred_region
          %s117 = sand.u32 %s27, 1
          %s118 = scalar_lea.sflag [#allocation3], %s117
          %s119 = sand.u32 %s27, 1
          %s120 = smul.addr %s119, 32
          %s121 = scalar_lea.vmem [#allocation2], %s120
          %123 = vsyncadd %s118, 0
          %s124 = smul.addr %s17, 4
          %s125 = smul.addr %s124, 8
          %s126 = scalar_lea.hbm %s0, %s125
          %s128 = sshll.u32 %s126, 4
          %s129 = int_to_ptr.hbm [resolvable:$true] %s128
          %s130 = sshll.u32 %s121, 4
          %s131 = int_to_ptr.vmem [resolvable:$true] %s130
          %133 = dma.hbm_to_vmem [thread:$0]  %s129, 512, %s131, %s118
        $region20: #{_ema_blend_slab.1} parent=15 // pred_fallthru
          _
        // Predicated region
        $region21: #{_ema_blend_slab.1} parent=15 // pred_check
          %p134 = pneg %p63
        $region22: #{_ema_blend_slab.1} parent=15 // pred_check_branch
          %136 = sbr.rel (%p134) target = $region24
        $region23: #{_ema_blend_slab.1} parent=15 // pred_region
          %s137 = sand.u32 %s53, 1
          %s138 = scalar_lea.sflag [#allocation6], %s137
          %s139 = sand.u32 %s53, 1
          %s140 = smul.addr %s139, 32
          %s141 = scalar_lea.vmem [#allocation5], %s140
          %143 = vsyncadd %s138, 0
          %s144 = smul.addr %s17, 4
          %s145 = smul.addr %s144, 8
          %s146 = scalar_lea.hbm %s1, %s145
          %s148 = sshll.u32 %s146, 4
          %s149 = int_to_ptr.hbm [resolvable:$true] %s148
          %s150 = sshll.u32 %s141, 4
          %s151 = int_to_ptr.vmem [resolvable:$true] %s150
          %153 = dma.hbm_to_vmem [thread:$0]  %s149, 512, %s151, %s138
        $region24: #{_ema_blend_slab.1} parent=15 // pred_fallthru
          _
      $region16: #{_ema_blend_slab.1} parent=5 // pred_fallthru
        _
      %p154 = scmp.le.s32.totalorder 1, %s17
      %p155 = scmp.lt.s32.totalorder %s17, 3
      %p156 = pnand %p154, %p155
      %p157 = pneg %p156
      // Predicated region
      $region25: #{_ema_blend_slab.1} parent=5 // pred_check
        _
      $region26: #{_ema_blend_slab.1} parent=5 // pred_check_branch
        %159 = sbr.rel (%p156) target = $region28
      $region27: #{_ema_blend_slab.1} parent=5 // pred_region
        %s160 = ssub.s32 %s17, 1
        %s161 = sand.u32 %s30, 1
        %s162 = scalar_lea.sflag [#allocation3], %s161
        %s163 = sand.u32 %s30, 1
        %s164 = smul.addr %s163, 32
        %s165 = scalar_lea.vmem [#allocation2], %s164
        // Predicated region
        $region29: #{_ema_blend_slab.1} parent=27 // pred_check
          %p166 = pneg %p43
        $region30: #{_ema_blend_slab.1} parent=27 // pred_check_branch
          %168 = sbr.rel (%p166) target = $region32
        $region31: #{_ema_blend_slab.1} parent=27 // pred_region
          %170 = dma.done %s162, 512
        $region32: #{_ema_blend_slab.1} parent=27 // pred_fallthru
          _
        %s171 = sand.u32 %s56, 1
        %s172 = scalar_lea.sflag [#allocation6], %s171
        %s173 = sand.u32 %s56, 1
        %s174 = smul.addr %s173, 32
        %s175 = scalar_lea.vmem [#allocation5], %s174
        // Predicated region
        $region33: #{_ema_blend_slab.1} parent=27 // pred_check
          %p176 = pneg %p69
        $region34: #{_ema_blend_slab.1} parent=27 // pred_check_branch
          %178 = sbr.rel (%p176) target = $region36
        $region35: #{_ema_blend_slab.1} parent=27 // pred_region
          %180 = dma.done %s172, 512
        $region36: #{_ema_blend_slab.1} parent=27 // pred_fallthru
          _
        %s181 = sand.u32 %s30, 1
        %s182 = scalar_lea.sflag [#allocation3], %s181
        %s183 = sand.u32 %s30, 1
        %s184 = smul.addr %s183, 32
        %s185 = scalar_lea.vmem [#allocation2], %s184
        %p186 = pneg %p43
        %p187 = pneg %p40
        %s188 = sand.u32 %s56, 1
        %s189 = scalar_lea.sflag [#allocation6], %s188
        %s190 = sand.u32 %s56, 1
        %s191 = smul.addr %s190, 32
        %s192 = scalar_lea.vmem [#allocation5], %s191
        %p193 = pneg %p69
        %p194 = pneg %p66
        %p195 = pneg %p95
        %p196 = pneg %p92
        %s197 = sand.u32 %s82, 1
        %s198 = scalar_lea.sflag [#allocation4], %s197
        %s199 = sand.u32 %s82, 1
        %s200 = smul.addr %s199, 32
        %s201 = scalar_lea.vmem [#allocation7], %s200
        %v202 = vld [vmem:[%s165] sm:$0xff]
        %v203 = vld [vmem:[%s165 + $0x8] sm:$0xff]
        %v204 = vld [vmem:[%s165 + $0x10] sm:$0xff]
        %v205 = vld [vmem:[%s165 + $0x18] sm:$0xff]
        %v206 = vld [vmem:[%s175] sm:$0xff]
        %v207 = vld [vmem:[%s175 + $0x8] sm:$0xff]
        %v208 = vld [vmem:[%s175 + $0x10] sm:$0xff]
        %v209 = vld [vmem:[%s175 + $0x18] sm:$0xff]
        %v210 = vmul.f32 %v202, 0.1
        %v211 = vmul.f32 %v203, 0.1
        %v212 = vmul.f32 %v204, 0.1
        %v213 = vmul.f32 %v205, 0.1
        %v214 = vmul.f32 %v206, 0.9
        %v215 = vmul.f32 %v207, 0.9
        %v216 = vmul.f32 %v208, 0.9
        %v217 = vmul.f32 %v209, 0.9
        %v218 = vadd.f32 %v210, %v214
        %v219 = vadd.f32 %v211, %v215
        %v220 = vadd.f32 %v212, %v216
        %v221 = vadd.f32 %v213, %v217
        %222 = vst [vmem:[%s201] sm:$0xff] %v218
        %223 = vst [vmem:[%s201 + $0x8] sm:$0xff] %v219
        %224 = vst [vmem:[%s201 + $0x10] sm:$0xff] %v220
        %225 = vst [vmem:[%s201 + $0x18] sm:$0xff] %v221
        %s226 = sand.u32 %s82, 1
        %s227 = scalar_lea.sflag [#allocation4], %s226
        %s228 = sand.u32 %s82, 1
        %s229 = smul.addr %s228, 32
        %s230 = scalar_lea.vmem [#allocation7], %s229
        // Predicated region
        $region37: #{_ema_blend_slab.1} parent=27 // pred_check
          %p231 = pneg %p92
        $region38: #{_ema_blend_slab.1} parent=27 // pred_check_branch
          %233 = sbr.rel (%p231) target = $region40
        $region39: #{_ema_blend_slab.1} parent=27 // pred_region
          %235 = vsyncadd %s227, 0
          %s236 = smul.addr %s22, 4
          %s237 = smul.addr %s236, 8
          %s238 = scalar_lea.hbm %s2, %s237
          %s240 = sshll.u32 %s230, 4
          %s241 = int_to_ptr.vmem [resolvable:$true] %s240
          %s242 = sshll.u32 %s238, 4
          %s243 = int_to_ptr.hbm [resolvable:$true] %s242
          %245 = dma.vmem_to_hbm [thread:$0]  %s241, 512, %s243, %s227
        $region40: #{_ema_blend_slab.1} parent=27 // pred_fallthru
          _
      $region28: #{_ema_blend_slab.1} parent=5 // pred_fallthru
        _
      %p246 = scmp.le.s32.totalorder 2, %s17
      // Predicated region
      $region41: #{_ema_blend_slab.1} parent=5 // pred_check
        %p247 = pneg %p246
      $region42: #{_ema_blend_slab.1} parent=5 // pred_check_branch
        %249 = sbr.rel (%p247) target = $region44
      $region43: #{_ema_blend_slab.1} parent=5 // pred_region
        %s250 = ssub.s32 %s17, 2
        // Predicated region
        $region45: #{_ema_blend_slab.1} parent=43 // pred_check
          %p251 = pneg %p98
        $region46: #{_ema_blend_slab.1} parent=43 // pred_check_branch
          %253 = sbr.rel (%p251) target = $region48
        $region47: #{_ema_blend_slab.1} parent=43 // pred_region
          %s254 = sand.u32 %s83, 1
          %s255 = scalar_lea.sflag [#allocation4], %s254
          %s256 = sand.u32 %s83, 1
          %s257 = smul.addr %s256, 32
          %s258 = scalar_lea.vmem [#allocation7], %s257
          %260 = dma.done %s255, 512
        $region48: #{_ema_blend_slab.1} parent=43 // pred_fallthru
          _
      $region44: #{_ema_blend_slab.1} parent=5 // pred_fallthru
        _
    $region6: #{_ema_blend_slab.1} parent=1 // loop_footer
      %s21 = sadd.s32 1, %s17
    $region7: #{_ema_blend_slab.1} parent=1 // loop_footer_branch
      %16 = sbr.rel target = $region3
    $region8: #{_ema_blend_slab.1} parent=1 // loop_exit
      _
    %261 = vsyncpa [#allocation3], 1
    %s262 = scalar_lea.sflag [#allocation3], 1
    %263 = vsyncpa %s262, 1
    %264 = vsyncpa [#allocation6], 1
    %s265 = scalar_lea.sflag [#allocation6], 1
    %266 = vsyncpa %s265, 1
    %267 = vsyncpa [#allocation4], 1
    %s268 = scalar_lea.sflag [#allocation4], 1
    %269 = vsyncpa %s268, 1

</llo_original>
